<compile_context>
chip_gen: v6e
topology: v6e:2x2x1
jax: 0.10.0
libtpu: 0.0.40
codegen_flags: <defaults>
</compile_context>

<pallas_src>
import functools

import jax
import jax.numpy as jnp
from jax.experimental import pallas as pl
from jax.experimental.pallas import tpu as pltpu

_DEFAULT_TILE_BYTES = 4 * 1024 * 1024   # ~4 MiB per block -> 16 MiB double-buffered in+out
_VMEM_LIMIT_BYTES = 48 * 1024 * 1024    # > v5e's 16 MiB scoped default, < v7x's 64 MiB physical
_LANES = 512                            # re-slab width for non-128-aligned minor dims


def _h_sigmoid_kernel(x_ref, o_ref, *, h_max):
    # Compute in f32 regardless of input dtype; cast once on store.
    x = x_ref[...].astype(jnp.float32)
    y = jnp.clip(x + 3.0, 0.0, 6.0) * (h_max / 6.0)
    o_ref[...] = y.astype(o_ref.dtype)


def _pick_block_rows(rows, lane_w, itemsize, tile_bytes):
    """Rows per block targeting ~tile_bytes, aligned to sublane packing."""
    row_align = 8 * max(1, 4 // itemsize)          # 8 f32 / 16 bf16 / 32 int8
    br = tile_bytes // (lane_w * itemsize)
    br = max(row_align, (br // row_align) * row_align)
    if rows <= br:
        return rows                                 # single full block — always legal
    return br


def _run_2d(x2d, h_max, tile_bytes):
    rows, lane_w = x2d.shape
    block_rows = _pick_block_rows(rows, lane_w, x2d.dtype.itemsize, tile_bytes)
    grid = (pl.cdiv(rows, block_rows),)             # partial final block is masked by Pallas
    return pl.pallas_call(
        functools.partial(_h_sigmoid_kernel, h_max=float(h_max)),
        out_shape=jax.ShapeDtypeStruct(x2d.shape, x2d.dtype),
        grid=grid,
        in_specs=[pl.BlockSpec((block_rows, lane_w), lambda i: (i, 0))],
        out_specs=pl.BlockSpec((block_rows, lane_w), lambda i: (i, 0)),
        compiler_params=pltpu.CompilerParams(
            dimension_semantics=("parallel",),
            vmem_limit_bytes=_VMEM_LIMIT_BYTES),
    )(x2d)


def h_sigmoid(x, h_max=1.0, *, tile_bytes=_DEFAULT_TILE_BYTES):
    """Pallas forward of h_sigmoid. `h_max` must be a static Python scalar."""
    orig_shape = x.shape
    n = x.size
    if n == 0:
        return x

    if x.ndim >= 1 and orig_shape[-1] % 128 == 0:
        # Fast path: minor dim is already lane-dense. Collapsing leading dims
        # is a free reshape (no relayout copy), so the kernel is a pure
        # HBM-streaming pass with unmasked stores.
        w = orig_shape[-1]
        x2d = x.reshape(n // w, w)
        out2d = _run_2d(x2d, h_max, tile_bytes)
        return out2d.reshape(orig_shape)

    # Ragged / non-128-aligned minor dim: flatten and re-slab to (rows, 512)
    # so stores are lane-dense. Pad only up to a multiple of _LANES
    # (<= 511 elements) — never up to a block multiple.
    # TODO(synk): handle the tail in-kernel (masked store on the last block)
    #             to avoid the wrapper-side jnp.pad / slice passes.
    rows = pl.cdiv(n, _LANES)
    padded_n = rows * _LANES
    flat = x.reshape(-1)
    if padded_n != n:
        flat = jnp.pad(flat, (0, padded_n - n))
    x2d = flat.reshape(rows, _LANES)
    out2d = _run_2d(x2d, h_max, tile_bytes)
    out_flat = out2d.reshape(-1)
    if padded_n != n:
        out_flat = out_flat[:n]
    return out_flat.reshape(orig_shape)


def _reference(x, h_max=1.0):
    y = jnp.clip(x.astype(jnp.float32) + 3.0, 0.0, 6.0) * (h_max / 6.0)
    return y.astype(x.dtype)


if __name__ == "__main__":
    key = jax.random.PRNGKey(0)
    k1, k2, k3, k4 = jax.random.split(key, 4)

    # 1) Small NCHW feature map (minor dim 16 -> re-slab path, padded tail).
    x = jax.random.normal(k1, (2, 4, 16, 16), dtype=jnp.float32) * 4.0
    out = jax.block_until_ready(h_sigmoid(x, h_max=1.0))
    assert out.shape == x.shape and out.dtype == x.dtype
    assert jnp.allclose(out, _reference(x, 1.0), atol=1e-6), "f32 mismatch"

    # 2) 128-aligned minor dim -> fast path (no relayout), single block.
    x_a = jax.random.normal(k2, (2, 16, 64, 128), dtype=jnp.float32) * 4.0
    out_a = jax.block_until_ready(h_sigmoid(x_a, h_max=1.0))
    assert out_a.shape == x_a.shape and out_a.dtype == x_a.dtype
    assert jnp.allclose(out_a, _reference(x_a, 1.0), atol=1e-6), \
        "aligned fast-path mismatch"

    # 3) Fast path with grid > 1 and a partial (masked) final block,
    #    forced at small size via a tiny tile budget.
    x_g = jax.random.normal(k3, (3, 5, 24, 128), dtype=jnp.float32) * 4.0
    out_g = jax.block_until_ready(h_sigmoid(x_g, h_max=1.0, tile_bytes=64 * 1024))
    assert out_g.shape == x_g.shape
    assert jnp.allclose(out_g, _reference(x_g, 1.0), atol=1e-6), \
        "tiled / partial-block mismatch"

    # 4) bf16 ragged size with h_max != 1 (padding + f32-internal math).
    x_bf = (jax.random.normal(k4, (2, 3, 5, 7), dtype=jnp.float32) * 4.0
            ).astype(jnp.bfloat16)
    out_bf = jax.block_until_ready(h_sigmoid(x_bf, h_max=2.0))
    assert out_bf.shape == x_bf.shape and out_bf.dtype == jnp.bfloat16
    assert jnp.allclose(out_bf.astype(jnp.float32),
                        _reference(x_bf, 2.0).astype(jnp.float32),
                        atol=2e-2), "bf16 mismatch"

    print("KERNEL_OK")
</pallas_src>

<mosaic_0001>
module attributes {stable_mosaic.version = 11 : i64} {
  func.func @_h_sigmoid_kernel(%arg0: i32, %arg1: memref<4x512xf32, #tpu.memory_space<vmem>>, %arg2: memref<4x512xf32, #tpu.memory_space<vmem>>) attributes {dimension_semantics = [#tpu.dimension_semantics<parallel>], iteration_bounds = array<i64: 1>, scalar_prefetch = 0 : i64, scratch_operands = 0 : i64, tpu.core_type = #tpu.core_type<tc>, window_params = [{transform_indices = @transform_0, window_bounds = array<i64: 4, 512>}, {transform_indices = @transform_1, window_bounds = array<i64: 4, 512>}]} {
    %c0 = arith.constant 0 : index
    %c0_0 = arith.constant 0 : index
    %0 = vector.load %arg1[%c0, %c0_0] : memref<4x512xf32, #tpu.memory_space<vmem>>, vector<4x512xf32>
    %cst = arith.constant 3.000000e+00 : f32
    %1 = vector.broadcast %cst : f32 to vector<4x512xf32>
    %2 = arith.addf %0, %1 : vector<4x512xf32>
    %cst_1 = arith.constant 0.000000e+00 : f32
    %cst_2 = arith.constant 6.000000e+00 : f32
    %3 = vector.broadcast %cst_1 : f32 to vector<4x512xf32>
    %4 = arith.maximumf %3, %2 : vector<4x512xf32>
    %5 = vector.broadcast %cst_2 : f32 to vector<4x512xf32>
    %6 = arith.minimumf %5, %4 : vector<4x512xf32>
    %cst_3 = arith.constant 0.166666672 : f32
    %7 = vector.broadcast %cst_3 : f32 to vector<4x512xf32>
    %8 = arith.mulf %6, %7 : vector<4x512xf32>
    %c0_4 = arith.constant 0 : index
    %c0_5 = arith.constant 0 : index
    %9 = vector.load %arg2[%c0_4, %c0_5] : memref<4x512xf32, #tpu.memory_space<vmem>>, vector<4x512xf32>
    tpu.vector_store %arg2[%c0_4, %c0_5], %8 {strides = array<i32>} : memref<4x512xf32, #tpu.memory_space<vmem>>, vector<4x512xf32>,
    return
  }
  func.func @transform_0(%arg0: i32) -> (i32, i32) {
    %c0_i32 = arith.constant 0 : i32
    %c0_i32_0 = arith.constant 0 : i32
    return %arg0, %c0_i32 : i32, i32
  }
  func.func @transform_1(%arg0: i32) -> (i32, i32) {
    %c0_i32 = arith.constant 0 : i32
    %c0_i32_0 = arith.constant 0 : i32
    return %arg0, %c0_i32 : i32, i32
  }
}

</mosaic_0001>

<llo_original>
// kernel: tpu_custom_call.1
$region0: #{tpu_custom_call.1}
  #allocation0 [shape = 'u32[]', space=smem, size = 0x4, offset = 0x4, fixed_abs, tag = 'smem constant byte address 0x4 - core index']
  #allocation1 [shape = 'u32[144,128]{1,0:T(1,128)}', space=vmem, size = 0x12000, scoped, tag = 'internal scratch']
  %s0 = inlined_call_operand.hbm [shape: f32[4,512], index: 0, kind: input, shape index: {}]
  %s1 = inlined_call_operand.hbm [shape: f32[4,512], index: 1, kind: output, shape index: {}]
  %s2 = sld [smem:[#allocation0]]
  $region18: #{tpu_custom_call.1} parent=0
    _
  %s4 = ssub.s32 1, %s2
  %s5 = scalar_select 0, %s4, %s2
  $region1: #{tpu_custom_call.1} parent=0
    #allocation2 [shape = 'u8[8192]{0}', space=vmem, size = 0x2000, scoped, tag = 'input window, operand 0, single buffered']
    #allocation3 [shape = 's32[1]{0}', space=sflag, size = 0x4, scoped, tag = 'scoped memory for tpu_custom_call.1']
    #allocation4 [shape = 's32[1]{0}', space=sflag, size = 0x4, scoped, tag = 'scoped memory for tpu_custom_call.1']
    #allocation5 [shape = 'u8[8192]{0}', space=vmem, size = 0x2000, scoped, tag = 'output window, operand 0, single buffered']
    %6 = vsyncpa [#allocation3], 0
    %7 = vsyncpa [#allocation4], 0
    // Predicated region
    $region2: #{tpu_custom_call.1} parent=1 // pred_check
      _
    $region3: #{tpu_custom_call.1} parent=1 // pred_check_branch
      %9 = sbr.rel (0) target = $region5
    $region4: #{tpu_custom_call.1} parent=1 // pred_region
      %s11 = ssub.s32 256, 256
      %12 = vsyncadd [#allocation3], %s11
      %s14 = sshll.u32 [#allocation2], 4
      %s15 = int_to_ptr.vmem [resolvable:$true] %s14
      %17 = dma.hbm_to_vmem [thread:$0]  %s0, 256, %s15, [#allocation3]
    $region5: #{tpu_custom_call.1} parent=1 // pred_fallthru
      _
    // Predicated region
    $region6: #{tpu_custom_call.1} parent=1 // pred_check
      _
    $region7: #{tpu_custom_call.1} parent=1 // pred_check_branch
      %19 = sbr.rel (0) target = $region9
    $region8: #{tpu_custom_call.1} parent=1 // pred_region
      %20 = dma.done [#allocation3], 256
    $region9: #{tpu_custom_call.1} parent=1 // pred_fallthru
      _
    %v21 = vld [vmem:[#allocation2] sm:$0xff]
    %v22 = vld [vmem:[#allocation2 + $0x8] sm:$0xff]
    %v23 = vadd.f32 %v21, 3.0
    %v24 = vadd.f32 %v22, 3.0
    %v25 = vmax.f32 %v23, 0.0
    %v26 = vmax.f32 %v24, 0.0
    %v27 = vmin.f32 %v25, 6.0
    %v28 = vmin.f32 %v26, 6.0
    %v29 = vmul.f32 %v27, 0.16666667
    %v30 = vmul.f32 %v28, 0.16666667
    %31 = vst [vmem:[#allocation5] sm:$0xff] %v29
    %32 = vst [vmem:[#allocation5 + $0x8] sm:$0xff] %v30
    // Predicated region
    $region10: #{tpu_custom_call.1} parent=1 // pred_check
      _
    $region11: #{tpu_custom_call.1} parent=1 // pred_check_branch
      %34 = sbr.rel (0) target = $region13
    $region12: #{tpu_custom_call.1} parent=1 // pred_region
      %s36 = ssub.s32 256, 256
      %37 = vsyncadd [#allocation4], %s36
      %s39 = sshll.u32 [#allocation5], 4
      %s40 = int_to_ptr.vmem [resolvable:$true] %s39
      %42 = dma.vmem_to_hbm [thread:$0]  %s40, 256, %s1, [#allocation4]
    $region13: #{tpu_custom_call.1} parent=1 // pred_fallthru
      _
    // Predicated region
    $region14: #{tpu_custom_call.1} parent=1 // pred_check
      _
    $region15: #{tpu_custom_call.1} parent=1 // pred_check_branch
      %44 = sbr.rel (0) target = $region17
    $region16: #{tpu_custom_call.1} parent=1 // pred_region
      %45 = dma.done [#allocation4], 256
    $region17: #{tpu_custom_call.1} parent=1 // pred_fallthru
      _
    %46 = vsyncpa [#allocation3], 1
    %47 = vsyncpa [#allocation4], 1

</llo_original>
